<compile_context>
chip_gen: v6e
topology: v6e:2x2x1
jax: 0.10.0
libtpu: 0.0.40
codegen_flags: <defaults>
</compile_context>

<pallas_src>
import math
import functools

import jax
import jax.numpy as jnp
from jax import lax
from jax.experimental import pallas as pl
from jax.experimental.pallas import tpu as pltpu


def _pick_tile(n, preferred):
    """Largest MXU-friendly tile that divides n (or n itself if it is small)."""
    if n <= preferred:
        return n
    t = preferred
    while t >= 128:
        if n % t == 0:
            return t
        t //= 2
    return n  # fallback: whole dim (keeps correctness for awkward sizes)


# ---------------------------------------------------------------------------
# Fast path: flash-style online softmax, output only.
# ---------------------------------------------------------------------------
def _flash_attn_kernel(vlen_ref, q_ref, k_ref, v_ref, o_ref,
                       m_scr, l_scr, acc_scr, *, scale):
    b = pl.program_id(0)
    kv = pl.program_id(2)
    tk = k_ref.shape[1]

    @pl.when(kv == 0)
    def _():
        m_scr[...] = jnp.full_like(m_scr, -jnp.inf)
        l_scr[...] = jnp.zeros_like(l_scr)
        acc_scr[...] = jnp.zeros_like(acc_scr)

    q = q_ref[0]          # (tq, D)
    k = k_ref[0]          # (tk, D)
    v = v_ref[0]          # (tk, Dv)

    # scores = Q @ K^T / sqrt(D), contracting over D without transposing K.
    s = lax.dot_general(q, k, (((1,), (1,)), ((), ())),
                        preferred_element_type=jnp.float32)
    s = s * jnp.float32(scale)

    # sequence_mask: columns >= valid_len get -1e6 before softmax.
    vl = vlen_ref[b]
    col = lax.broadcasted_iota(jnp.int32, s.shape, 1) + kv * tk
    s = jnp.where(col >= vl, jnp.float32(-1000000.0), s)

    # Online softmax update.
    m_prev = m_scr[...]
    m_new = jnp.maximum(m_prev, jnp.max(s, axis=-1, keepdims=True))
    alpha = jnp.exp(m_prev - m_new)
    p = jnp.exp(s - m_new)
    l_scr[...] = alpha * l_scr[...] + jnp.sum(p, axis=-1, keepdims=True)
    acc_scr[...] = alpha * acc_scr[...] + jnp.dot(
        p.astype(v.dtype), v, preferred_element_type=jnp.float32)
    m_scr[...] = m_new

    @pl.when(kv == pl.num_programs(2) - 1)
    def _():
        # Single reciprocal per output tile at finalize.
        o_ref[0] = (acc_scr[...] * pl.reciprocal(l_scr[...], approx=False)
                    ).astype(o_ref.dtype)


# ---------------------------------------------------------------------------
# Weights path: also materializes the (Tq, Tk) attention weights (as the
# PyTorch module stores them).  Tiled over query rows only.
# ---------------------------------------------------------------------------
def _attn_with_weights_kernel(vlen_ref, q_ref, k_ref, v_ref, o_ref, w_ref,
                              *, scale):
    b = pl.program_id(0)

    q = q_ref[0]          # (tq, D)
    k = k_ref[0]          # (Tk, D)
    v = v_ref[0]          # (Tk, Dv)

    s = lax.dot_general(q, k, (((1,), (1,)), ((), ())),
                        preferred_element_type=jnp.float32)
    s = s * jnp.float32(scale)

    vl = vlen_ref[b]
    col = lax.broadcasted_iota(jnp.int32, s.shape, 1)
    s = jnp.where(col >= vl, jnp.float32(-1000000.0), s)

    m = jnp.max(s, axis=-1, keepdims=True)
    e = jnp.exp(s - m)
    l = jnp.sum(e, axis=-1, keepdims=True)
    w = e * pl.reciprocal(l, approx=False)

    w_ref[0] = w.astype(w_ref.dtype)
    o_ref[0] = jnp.dot(w.astype(v.dtype), v,
                       preferred_element_type=jnp.float32).astype(o_ref.dtype)


# ---------------------------------------------------------------------------
# Wrapper
# ---------------------------------------------------------------------------
def dot_product_attention(Q, K, V, valid_lens=None, *,
                          block_q=256, block_k=256, return_weights=False):
    """Matches DotProductAttention.forward (dropout = identity).

    Returns `output` (B, Tq, Dv) by default; with return_weights=True returns
    (output, attention_weights) like the previous implementation.
    """
    B, Tq, D = Q.shape
    Bk, Tk, Dk = K.shape
    Bv, Tkv, Dv = V.shape
    assert (Bk, Dk) == (B, D) and (Bv, Tkv) == (B, Tk)
    scale = 1.0 / math.sqrt(D)
    out_dtype = Q.dtype

    if valid_lens is None:
        valid_lens = jnp.full((B,), Tk, dtype=jnp.int32)
    valid_lens = jnp.asarray(valid_lens, dtype=jnp.int32)
    assert valid_lens.shape == (B,), "only 1-D valid_lens supported"

    tq = _pick_tile(Tq, block_q)

    if return_weights:
        grid_spec = pltpu.PrefetchScalarGridSpec(
            num_scalar_prefetch=1,
            grid=(B, Tq // tq),
            in_specs=[
                pl.BlockSpec((1, tq, D), lambda b, qi, vl: (b, qi, 0)),
                pl.BlockSpec((1, Tk, D), lambda b, qi, vl: (b, 0, 0)),
                pl.BlockSpec((1, Tk, Dv), lambda b, qi, vl: (b, 0, 0)),
            ],
            out_specs=[
                pl.BlockSpec((1, tq, Dv), lambda b, qi, vl: (b, qi, 0)),
                pl.BlockSpec((1, tq, Tk), lambda b, qi, vl: (b, qi, 0)),
            ],
        )
        out, attn_w = pl.pallas_call(
            functools.partial(_attn_with_weights_kernel, scale=scale),
            grid_spec=grid_spec,
            out_shape=(
                jax.ShapeDtypeStruct((B, Tq, Dv), out_dtype),
                jax.ShapeDtypeStruct((B, Tq, Tk), jnp.float32),
            ),
            compiler_params=pltpu.CompilerParams(
                dimension_semantics=("parallel", "parallel")),
        )(valid_lens, Q, K, V)
        return out, attn_w

    tk = _pick_tile(Tk, block_k)

    grid_spec = pltpu.PrefetchScalarGridSpec(
        num_scalar_prefetch=1,
        grid=(B, Tq // tq, Tk // tk),
        in_specs=[
            pl.BlockSpec((1, tq, D), lambda b, qi, ki, vl: (b, qi, 0)),
            pl.BlockSpec((1, tk, D), lambda b, qi, ki, vl: (b, ki, 0)),
            pl.BlockSpec((1, tk, Dv), lambda b, qi, ki, vl: (b, ki, 0)),
        ],
        out_specs=pl.BlockSpec((1, tq, Dv), lambda b, qi, ki, vl: (b, qi, 0)),
        scratch_shapes=[
            pltpu.VMEM((tq, 1), jnp.float32),    # running max m
            pltpu.VMEM((tq, 1), jnp.float32),    # running denom l
            pltpu.VMEM((tq, Dv), jnp.float32),   # output accumulator
        ],
    )
    out = pl.pallas_call(
        functools.partial(_flash_attn_kernel, scale=scale),
        grid_spec=grid_spec,
        out_shape=jax.ShapeDtypeStruct((B, Tq, Dv), out_dtype),
        compiler_params=pltpu.CompilerParams(
            dimension_semantics=("parallel", "parallel", "arbitrary")),
    )(valid_lens, Q, K, V)
    return out


# ---------------------------------------------------------------------------
# Pure-JAX reference
# ---------------------------------------------------------------------------
def _reference(Q, K, V, valid_lens):
    d = Q.shape[-1]
    scores = jnp.einsum("bqd,bkd->bqk", Q, K) / math.sqrt(d)
    col = jnp.arange(K.shape[1])[None, None, :]
    mask = col >= valid_lens[:, None, None]
    scores = jnp.where(mask, -1000000.0, scores)
    w = jax.nn.softmax(scores, axis=-1)
    return jnp.einsum("bqk,bkd->bqd", w, V), w


if __name__ == "__main__":
    key = jax.random.PRNGKey(0)

    # --- small shapes (module-scale toy test), checks weights too ---
    B, Tq, Tk, D, Dv = 2, 8, 8, 32, 32
    kq, kk, kv = jax.random.split(key, 3)
    Q = jax.random.normal(kq, (B, Tq, D), dtype=jnp.float32)
    K = jax.random.normal(kk, (B, Tk, D), dtype=jnp.float32)
    V = jax.random.normal(kv, (B, Tk, Dv), dtype=jnp.float32)
    valid_lens = jnp.array([3, 6], dtype=jnp.int32)

    out_w, attn_w = dot_product_attention(Q, K, V, valid_lens, return_weights=True)
    out_fast = dot_product_attention(Q, K, V, valid_lens)
    jax.block_until_ready((out_w, attn_w, out_fast))

    ref_out, ref_w = _reference(Q, K, V, valid_lens)
    assert jnp.allclose(out_w, ref_out, atol=1e-4, rtol=1e-4)
    assert jnp.allclose(attn_w, ref_w, atol=1e-4, rtol=1e-4)
    assert jnp.allclose(out_fast, ref_out, atol=1e-4, rtol=1e-4)

    # --- larger shapes exercising the tiled flash path (multi Tk steps) ---
    B2, Tq2, Tk2, D2, Dv2 = 2, 256, 256, 64, 64
    k2q, k2k, k2v = jax.random.split(jax.random.PRNGKey(0), 3)
    Q2 = jax.random.normal(k2q, (B2, Tq2, D2), dtype=jnp.float32)
    K2 = jax.random.normal(k2k, (B2, Tk2, D2), dtype=jnp.float32)
    V2 = jax.random.normal(k2v, (B2, Tk2, Dv2), dtype=jnp.float32)
    vl2 = jnp.array([100, 256], dtype=jnp.int32)

    out2 = dot_product_attention(Q2, K2, V2, vl2, block_q=128, block_k=128)
    jax.block_until_ready(out2)
    ref_out2, _ = _reference(Q2, K2, V2, vl2)
    assert jnp.allclose(out2, ref_out2, atol=1e-3, rtol=1e-3)

    print("KERNEL_OK")
</pallas_src>

<mosaic_0001>
module attributes {stable_mosaic.version = 11 : i64} {
  func.func @_attn_with_weights_kernel(%arg0: i32, %arg1: i32, %arg2: memref<2xi32, #tpu.memory_space<smem>>, %arg3: memref<1x8x32xf32, #tpu.memory_space<vmem>>, %arg4: memref<1x8x32xf32, #tpu.memory_space<vmem>>, %arg5: memref<1x8x32xf32, #tpu.memory_space<vmem>>, %arg6: memref<1x8x32xf32, #tpu.memory_space<vmem>>, %arg7: memref<1x8x8xf32, #tpu.memory_space<vmem>>) attributes {dimension_semantics = [#tpu.dimension_semantics<parallel>, #tpu.dimension_semantics<parallel>], iteration_bounds = array<i64: 2, 1>, scalar_prefetch = 1 : i64, scratch_operands = 0 : i64, tpu.core_type = #tpu.core_type<tc>, window_params = [{transform_indices = @transform_0, window_bounds = array<i64: 1, 8, 32>}, {transform_indices = @transform_1, window_bounds = array<i64: 1, 8, 32>}, {transform_indices = @transform_2, window_bounds = array<i64: 1, 8, 32>}, {transform_indices = @transform_3, window_bounds = array<i64: 1, 8, 32>}, {transform_indices = @transform_4, window_bounds = array<i64: 1, 8, 8>}]} {
    %c0 = arith.constant 0 : index
    %c0_0 = arith.constant 0 : index
    %c0_1 = arith.constant 0 : index
    %0 = vector.load %arg3[%c0, %c0_0, %c0_1] : memref<1x8x32xf32, #tpu.memory_space<vmem>>, vector<1x8x32xf32>
    %1 = vector.shape_cast %0 : vector<1x8x32xf32> to vector<8x32xf32>
    %c0_2 = arith.constant 0 : index
    %c0_3 = arith.constant 0 : index
    %c0_4 = arith.constant 0 : index
    %2 = vector.load %arg4[%c0_2, %c0_3, %c0_4] : memref<1x8x32xf32, #tpu.memory_space<vmem>>, vector<1x8x32xf32>
    %3 = vector.shape_cast %2 : vector<1x8x32xf32> to vector<8x32xf32>
    %c0_5 = arith.constant 0 : index
    %c0_6 = arith.constant 0 : index
    %c0_7 = arith.constant 0 : index
    %4 = vector.load %arg5[%c0_5, %c0_6, %c0_7] : memref<1x8x32xf32, #tpu.memory_space<vmem>>, vector<1x8x32xf32>
    %5 = vector.shape_cast %4 : vector<1x8x32xf32> to vector<8x32xf32>
    %cst = arith.constant dense<0.000000e+00> : vector<8x8xf32>
    %6 = tpu.matmul %1, %3, %cst {dimension_numbers = #tpu.dot_dimension_numbers<[1], [1], [0], [0], [0, 0, 1, 0], [], []>} : vector<8x32xf32>, vector<8x32xf32>, vector<8x8xf32> -> vector<8x8xf32>
    %cst_8 = arith.constant 0.176776692 : f32
    %7 = vector.broadcast %cst_8 : f32 to vector<8x8xf32>
    %8 = arith.mulf %6, %7 : vector<8x8xf32>
    %9 = arith.index_cast %arg0 : i32 to index
    %10 = memref.load %arg2[%9] : memref<2xi32, #tpu.memory_space<smem>>
    %11 = tpu.iota {dimensions = array<i32: 1>} : vector<8x8xi32>
    %12 = vector.broadcast %10 : i32 to vector<8x8xi32>
    %13 = arith.cmpi sge, %11, %12 : vector<8x8xi32>
    %cst_9 = arith.constant -1.000000e+06 : f32
    %14 = vector.broadcast %cst_9 : f32 to vector<8x8xf32>
    %15 = arith.select %13, %14, %8 : vector<8x8xi1>, vector<8x8xf32>
    %cst_10 = arith.constant dense<0xFF800000> : vector<8xf32>
    %16 = vector.multi_reduction <maximumf>, %15, %cst_10 [1] : vector<8x8xf32> to vector<8xf32>
    %17 = vector.shape_cast %16 : vector<8xf32> to vector<8x1xf32>
    %18 = vector.broadcast %17 : vector<8x1xf32> to vector<8x8xf32>
    %19 = arith.subf %15, %18 : vector<8x8xf32>
    %20 = math.exp %19 : vector<8x8xf32>
    %cst_11 = arith.constant dense<0.000000e+00> : vector<8xf32>
    %21 = vector.multi_reduction <add>, %20, %cst_11 [1] : vector<8x8xf32> to vector<8xf32>
    %22 = vector.shape_cast %21 : vector<8xf32> to vector<8x1xf32>
    %23 = tpu.reciprocal %22 : vector<8x1xf32> -> vector<8x1xf32>
    %24 = vector.broadcast %23 : vector<8x1xf32> to vector<8x8xf32>
    %25 = arith.mulf %20, %24 : vector<8x8xf32>
    %c0_12 = arith.constant 0 : index
    %c0_13 = arith.constant 0 : index
    %c0_14 = arith.constant 0 : index
    %26 = vector.load %arg7[%c0_12, %c0_13, %c0_14] : memref<1x8x8xf32, #tpu.memory_space<vmem>>, vector<1x8x8xf32>
    %27 = vector.shape_cast %26 : vector<1x8x8xf32> to vector<8x8xf32>
    %28 = vector.shape_cast %25 : vector<8x8xf32> to vector<1x8x8xf32>
    tpu.vector_store %arg7[%c0_12, %c0_13, %c0_14], %28 {strides = array<i32>} : memref<1x8x8xf32, #tpu.memory_space<vmem>>, vector<1x8x8xf32>,
    %cst_15 = arith.constant dense<0.000000e+00> : vector<8x32xf32>
    %29 = tpu.matmul %25, %5, %cst_15 {dimension_numbers = #tpu.dot_dimension_numbers<[1], [0], [0], [1], [0, 0, 1, 1], [], []>} : vector<8x8xf32>, vector<8x32xf32>, vector<8x32xf32> -> vector<8x32xf32>
    %c0_16 = arith.constant 0 : index
    %c0_17 = arith.constant 0 : index
    %c0_18 = arith.constant 0 : index
    %30 = vector.load %arg6[%c0_16, %c0_17, %c0_18] : memref<1x8x32xf32, #tpu.memory_space<vmem>>, vector<1x8x32xf32>
    %31 = vector.shape_cast %30 : vector<1x8x32xf32> to vector<8x32xf32>
    %32 = vector.shape_cast %29 : vector<8x32xf32> to vector<1x8x32xf32>
    tpu.vector_store %arg6[%c0_16, %c0_17, %c0_18], %32 {strides = array<i32>} : memref<1x8x32xf32, #tpu.memory_space<vmem>>, vector<1x8x32xf32>,
    return
  }
  func.func @transform_0(%arg0: i32, %arg1: i32, %arg2: memref<2xi32, #tpu.memory_space<smem>>) -> (i32, i32, i32) {
    %c0_i32 = arith.constant 0 : i32
    %c0_i32_0 = arith.constant 0 : i32
    return %arg0, %arg1, %c0_i32 : i32, i32, i32
  }
  func.func @transform_1(%arg0: i32, %arg1: i32, %arg2: memref<2xi32, #tpu.memory_space<smem>>) -> (i32, i32, i32) {
    %c0_i32 = arith.constant 0 : i32
    %c0_i32_0 = arith.constant 0 : i32
    %c0_i32_1 = arith.constant 0 : i32
    return %arg0, %c0_i32, %c0_i32_0 : i32, i32, i32
  }
  func.func @transform_2(%arg0: i32, %arg1: i32, %arg2: memref<2xi32, #tpu.memory_space<smem>>) -> (i32, i32, i32) {
    %c0_i32 = arith.constant 0 : i32
    %c0_i32_0 = arith.constant 0 : i32
    %c0_i32_1 = arith.constant 0 : i32
    return %arg0, %c0_i32, %c0_i32_0 : i32, i32, i32
  }
  func.func @transform_3(%arg0: i32, %arg1: i32, %arg2: memref<2xi32, #tpu.memory_space<smem>>) -> (i32, i32, i32) {
    %c0_i32 = arith.constant 0 : i32
    %c0_i32_0 = arith.constant 0 : i32
    return %arg0, %arg1, %c0_i32 : i32, i32, i32
  }
  func.func @transform_4(%arg0: i32, %arg1: i32, %arg2: memref<2xi32, #tpu.memory_space<smem>>) -> (i32, i32, i32) {
    %c0_i32 = arith.constant 0 : i32
    %c0_i32_0 = arith.constant 0 : i32
    return %arg0, %arg1, %c0_i32 : i32, i32, i32
  }
}

</mosaic_0001>

<llo_original>
// kernel: tpu_custom_call.1
$region0: #{tpu_custom_call.1}
  #allocation0 [shape = 'u32[]', space=smem, size = 0x4, offset = 0x4, fixed_abs, tag = 'smem constant byte address 0x4 - core index']
  #allocation1 [shape = 'u32[144,128]{1,0:T(1,128)}', space=vmem, size = 0x12000, scoped, tag = 'internal scratch']
  #allocation2 [shape = 's32[1]{0}', space=sflag, size = 0x4, scoped, tag = 'scoped memory for tpu_custom_call.1']
  #allocation3 [shape = 'u8[512]{0}', space=smem, size = 0x200, scoped, tag = 'prefetched SMEM operand 0']
  %s0 = inlined_call_operand.hbm [shape: s32[2], index: 0, kind: input, shape index: {}]
  %s1 = inlined_call_operand.hbm [shape: f32[2,8,32], index: 1, kind: input, shape index: {}]
  %s2 = inlined_call_operand.hbm [shape: f32[2,8,32], index: 2, kind: input, shape index: {}]
  %s3 = inlined_call_operand.hbm [shape: f32[2,8,32], index: 3, kind: input, shape index: {}]
  %s4 = inlined_call_operand.hbm [shape: f32[2,8,32], index: 4, kind: output, shape index: {0}]
  %s5 = inlined_call_operand.hbm [shape: f32[2,8,8], index: 5, kind: output, shape index: {1}]
  %6 = xla_tuple %s4, %s5
  %s7 = sld [smem:[#allocation0]]
  $region65: #{tpu_custom_call.1} parent=0
    _
  %s9 = ssub.s32 1, %s7
  %s10 = scalar_select 0, %s9, %s7
  %12 = dma.hbm_to_smem %s0, 16, [#allocation3], [#allocation2]
  %13 = dma.done [#allocation2], 16
  %14 = sfence
  $region1: #{tpu_custom_call.1} parent=0
    #allocation4 [shape = 'u8[8192]{0}', space=vmem, size = 0x2000, scoped, tag = 'input window, operand 1']
    #allocation5 [shape = 's32[2]{0}', space=sflag, size = 0x8, scoped, tag = 'scoped memory for tpu_custom_call.1']
    #allocation6 [shape = 's32[2]{0}', space=sflag, size = 0x8, scoped, tag = 'scoped memory for tpu_custom_call.1']
    #allocation7 [shape = 'u8[8192]{0}', space=vmem, size = 0x2000, scoped, tag = 'input window, operand 2']
    #allocation8 [shape = 's32[2]{0}', space=sflag, size = 0x8, scoped, tag = 'scoped memory for tpu_custom_call.1']
    #allocation9 [shape = 'u8[8192]{0}', space=vmem, size = 0x2000, scoped, tag = 'input window, operand 3']
    #allocation10 [shape = 'u8[8192]{0}', space=vmem, size = 0x2000, scoped, tag = 'output window, operand 0']
    #allocation11 [shape = 'u8[8192]{0}', space=vmem, size = 0x2000, scoped, tag = 'output window, operand 1']
    #allocation12 [shape = 's32[2]{0}', space=sflag, size = 0x8, scoped, tag = 'scoped memory for tpu_custom_call.1']
    %15 = vsyncpa [#allocation5], 0
    %s16 = scalar_lea.sflag [#allocation5], 1
    %17 = vsyncpa %s16, 0
    %18 = vsyncpa [#allocation8], 0
    %s19 = scalar_lea.sflag [#allocation8], 1
    %20 = vsyncpa %s19, 0
    %21 = vsyncpa [#allocation6], 0
    %s22 = scalar_lea.sflag [#allocation6], 1
    %23 = vsyncpa %s22, 0
    %24 = vsyncpa [#allocation12], 0
    %s25 = scalar_lea.sflag [#allocation12], 1
    %26 = vsyncpa %s25, 0
    loop: start=0, step=1, limit=4
    $region2: #{tpu_custom_call.1} parent=1 // loop_pre_header
      _
    $region3: #{tpu_custom_call.1} parent=1 // loop_header
      %s28 = sphi 0, %s32
      %p29 = scmp.ge.s32.totalorder %s28, 4
      %s35 = sphi 0, %s47
      %s36 = sphi 0, %s43
      %s37 = sphi 0, %s35
      %s38 = sphi 0, %s36
      %s39 = sphi 0, %s37
      %s40 = sphi 0, %s38
      %s52 = sphi 0, %s54
      %s55 = sphi 0, %s52
      %s56 = sphi 0, %s55
      %s72 = sphi 0, %s56
      %s78 = sphi 0, %s80
      %s81 = sphi 0, %s78
      %s82 = sphi 0, %s81
      %s98 = sphi 0, %s82
      %s104 = sphi 0, %s106
      %s107 = sphi 0, %s104
      %s108 = sphi 0, %s107
      %s124 = sphi 0, %s108
      %s132 = sphi 0, %s134
      %s135 = sphi 0, %s132
      %s136 = sphi 0, %s135
      %s152 = sphi 0, %s136
      %s160 = sphi 0, %s162
      %s163 = sphi 0, %s160
      %s164 = sphi 0, %s163
      %s180 = sphi 0, %s164
    $region4: #{tpu_custom_call.1} parent=1 // loop_header_branch
      %31 = sbr.rel (%p29) target = $region8
    $region5: #{tpu_custom_call.1} parent=1 // loop_body
      %s33 = ssub.s32 %s28, 1
      %s34 = ssub.s32 %s28, 2
      %s41 = sadd.s32 1, %s36
      %p42 = scmp.ge.s32.totalorder %s41, 1
      %s43 = scalar_select %p42, 0, %s41
      %s44 = sadd.s32 1, %s35
      %s45 = scalar_select %p42, %s44, %s35
      %p46 = scmp.ge.s32.totalorder %s45, 2
      %s47 = scalar_select %p46, 0, %s45
      %s48 = ssub.s32 %s35, %s47
      %s49 = ssub.s32 %s36, %s43
      %s50 = sor.u32 %s48, %s49
      %p51 = scmp.eq.s32.totalorder %s50, 0
      %s53 = sadd.s32 %s52, 1
      %s54 = scalar_select %p51, %s52, %s53
      %p57 = pneg %p51
      %p58 = scmp.eq.s32.totalorder %s28, 1
      %p59 = por %p57, %p58
      %p60 = scmp.ne.s32.totalorder %s52, %s55
      %p61 = scmp.eq.s32.totalorder %s28, 0
      %p62 = por %p60, %p61
      %p63 = scmp.ne.s32.totalorder %s52, %s55
      %p64 = scmp.eq.s32.totalorder %s33, 1
      %p65 = por %p63, %p64
      %p66 = scmp.ne.s32.totalorder %s55, %s56
      %p67 = scmp.eq.s32.totalorder %s33, 0
      %p68 = por %p66, %p67
      %p69 = scmp.ne.s32.totalorder %s55, %s56
      %p70 = scmp.eq.s32.totalorder %s34, 1
      %p71 = por %p69, %p70
      %p73 = scmp.ne.s32.totalorder %s56, %s72
      %p74 = scmp.eq.s32.totalorder %s34, 0
      %p75 = por %p73, %p74
      %s76 = ssub.s32 %s35, %s47
      %p77 = scmp.eq.s32.totalorder %s76, 0
      %s79 = sadd.s32 %s78, 1
      %s80 = scalar_select %p77, %s78, %s79
      %p83 = pneg %p77
      %p84 = scmp.eq.s32.totalorder %s28, 1
      %p85 = por %p83, %p84
      %p86 = scmp.ne.s32.totalorder %s78, %s81
      %p87 = scmp.eq.s32.totalorder %s28, 0
      %p88 = por %p86, %p87
      %p89 = scmp.ne.s32.totalorder %s78, %s81
      %p90 = scmp.eq.s32.totalorder %s33, 1
      %p91 = por %p89, %p90
      %p92 = scmp.ne.s32.totalorder %s81, %s82
      %p93 = scmp.eq.s32.totalorder %s33, 0
      %p94 = por %p92, %p93
      %p95 = scmp.ne.s32.totalorder %s81, %s82
      %p96 = scmp.eq.s32.totalorder %s34, 1
      %p97 = por %p95, %p96
      %p99 = scmp.ne.s32.totalorder %s82, %s98
      %p100 = scmp.eq.s32.totalorder %s34, 0
      %p101 = por %p99, %p100
      %s102 = ssub.s32 %s35, %s47
      %p103 = scmp.eq.s32.totalorder %s102, 0
      %s105 = sadd.s32 %s104, 1
      %s106 = scalar_select %p103, %s104, %s105
      %p109 = pneg %p103
      %p110 = scmp.eq.s32.totalorder %s28, 1
      %p111 = por %p109, %p110
      %p112 = scmp.ne.s32.totalorder %s104, %s107
      %p113 = scmp.eq.s32.totalorder %s28, 0
      %p114 = por %p112, %p113
      %p115 = scmp.ne.s32.totalorder %s104, %s107
      %p116 = scmp.eq.s32.totalorder %s33, 1
      %p117 = por %p115, %p116
      %p118 = scmp.ne.s32.totalorder %s107, %s108
      %p119 = scmp.eq.s32.totalorder %s33, 0
      %p120 = por %p118, %p119
      %p121 = scmp.ne.s32.totalorder %s107, %s108
      %p122 = scmp.eq.s32.totalorder %s34, 1
      %p123 = por %p121, %p122
      %p125 = scmp.ne.s32.totalorder %s108, %s124
      %p126 = scmp.eq.s32.totalorder %s34, 0
      %p127 = por %p125, %p126
      %s128 = ssub.s32 %s35, %s47
      %s129 = ssub.s32 %s36, %s43
      %s130 = sor.u32 %s128, %s129
      %p131 = scmp.eq.s32.totalorder %s130, 0
      %s133 = sadd.s32 %s132, 1
      %s134 = scalar_select %p131, %s132, %s133
      %p137 = pneg %p131
      %p138 = scmp.eq.s32.totalorder %s28, 1
      %p139 = por %p137, %p138
      %p140 = scmp.ne.s32.totalorder %s132, %s135
      %p141 = scmp.eq.s32.totalorder %s28, 0
      %p142 = por %p140, %p141
      %p143 = scmp.ne.s32.totalorder %s132, %s135
      %p144 = scmp.eq.s32.totalorder %s33, 1
      %p145 = por %p143, %p144
      %p146 = scmp.ne.s32.totalorder %s135, %s136
      %p147 = scmp.eq.s32.totalorder %s33, 0
      %p148 = por %p146, %p147
      %p149 = scmp.ne.s32.totalorder %s135, %s136
      %p150 = scmp.eq.s32.totalorder %s34, 1
      %p151 = por %p149, %p150
      %p153 = scmp.ne.s32.totalorder %s136, %s152
      %p154 = scmp.eq.s32.totalorder %s34, 0
      %p155 = por %p153, %p154
      %s156 = ssub.s32 %s35, %s47
      %s157 = ssub.s32 %s36, %s43
      %s158 = sor.u32 %s156, %s157
      %p159 = scmp.eq.s32.totalorder %s158, 0
      %s161 = sadd.s32 %s160, 1
      %s162 = scalar_select %p159, %s160, %s161
      %p165 = pneg %p159
      %p166 = scmp.eq.s32.totalorder %s28, 1
      %p167 = por %p165, %p166
      %p168 = scmp.ne.s32.totalorder %s160, %s163
      %p169 = scmp.eq.s32.totalorder %s28, 0
      %p170 = por %p168, %p169
      %p171 = scmp.ne.s32.totalorder %s160, %s163
      %p172 = scmp.eq.s32.totalorder %s33, 1
      %p173 = por %p171, %p172
      %p174 = scmp.ne.s32.totalorder %s163, %s164
      %p175 = scmp.eq.s32.totalorder %s33, 0
      %p176 = por %p174, %p175
      %p177 = scmp.ne.s32.totalorder %s163, %s164
      %p178 = scmp.eq.s32.totalorder %s34, 1
      %p179 = por %p177, %p178
      %p181 = scmp.ne.s32.totalorder %s164, %s180
      %p182 = scmp.eq.s32.totalorder %s34, 0
      %p183 = por %p181, %p182
      %p184 = scmp.le.s32.totalorder 1, %s28
      %p185 = scmp.lt.s32.totalorder %s28, 3
      %p186 = pnand %p184, %p185
      %p187 = pneg %p186
      // Predicated region
      $region9: #{tpu_custom_call.1} parent=5 // pred_check
        _
      $region10: #{tpu_custom_call.1} parent=5 // pred_check_branch
        %189 = sbr.rel (%p186) target = $region12
      $region11: #{tpu_custom_call.1} parent=5 // pred_region
        %s190 = ssub.s32 %s28, 1
      $region12: #{tpu_custom_call.1} parent=5 // pred_fallthru
        _
      %p191 = scmp.lt.s32.totalorder %s28, 2
      // Predicated region
      $region13: #{tpu_custom_call.1} parent=5 // pred_check
        %p192 = pneg %p191
      $region14: #{tpu_custom_call.1} parent=5 // pred_check_branch
        %194 = sbr.rel (%p192) target = $region16
      $region15: #{tpu_custom_call.1} parent=5 // pred_region
        // Predicated region
        $region17: #{tpu_custom_call.1} parent=15 // pred_check
          %p195 = pneg %p62
        $region18: #{tpu_custom_call.1} parent=15 // pred_check_branch
          %197 = sbr.rel (%p195) target = $region20
        $region19: #{tpu_custom_call.1} parent=15 // pred_region
          %s198 = sand.u32 %s52, 1
          %s199 = scalar_lea.sflag [#allocation5], %s198
          %s200 = sand.u32 %s52, 1
          %s201 = smul.addr %s200, 8
          %s202 = scalar_lea.vmem [#allocation4], %s201
          %s204 = ssub.s32 128, 128
          %205 = vsyncadd %s199, %s204
          %s206 = sadd.s32 %s36, %s35
          %s207 = smul.addr %s206, 128
          %s208 = scalar_lea.hbm %s1, %s207
          %s210 = sshll.u32 %s202, 4
          %s211 = int_to_ptr.vmem [resolvable:$true] %s210
          %213 = dma.hbm_to_vmem [thread:$0]  %s208, 128, %s211, %s199
        $region20: #{tpu_custom_call.1} parent=15 // pred_fallthru
          _
        // Predicated region
        $region21: #{tpu_custom_call.1} parent=15 // pred_check
          %p214 = pneg %p88
        $region22: #{tpu_custom_call.1} parent=15 // pred_check_branch
          %216 = sbr.rel (%p214) target = $region24
        $region23: #{tpu_custom_call.1} parent=15 // pred_region
          %s217 = sand.u32 %s28, 1
          %s218 = scalar_lea.sflag [#allocation8], %s217
          %s219 = sand.u32 %s78, 1
          %s220 = smul.addr %s219, 8
          %s221 = scalar_lea.vmem [#allocation7], %s220
          %s223 = ssub.s32 128, 128
          %224 = vsyncadd %s218, %s223
          %s225 = smul.addr %s35, 128
          %s226 = scalar_lea.hbm %s2, %s225
          %s228 = sshll.u32 %s221, 4
          %s229 = int_to_ptr.vmem [resolvable:$true] %s228
          %231 = dma.hbm_to_vmem [thread:$0]  %s226, 128, %s229, %s218
        $region24: #{tpu_custom_call.1} parent=15 // pred_fallthru
          _
        // Predicated region
        $region25: #{tpu_custom_call.1} parent=15 // pred_check
          %p232 = pneg %p114
        $region26: #{tpu_custom_call.1} parent=15 // pred_check_branch
          %234 = sbr.rel (%p232) target = $region28
        $region27: #{tpu_custom_call.1} parent=15 // pred_region
          %s235 = sand.u32 %s28, 1
          %s236 = scalar_lea.sflag [#allocation8], %s235
          %s237 = sand.u32 %s104, 1
          %s238 = smul.addr %s237, 8
          %s239 = scalar_lea.vmem [#allocation9], %s238
          %s241 = ssub.s32 128, 128
          %242 = vsyncadd %s236, %s241
          %s243 = smul.addr %s35, 128
          %s244 = scalar_lea.hbm %s3, %s243
          %s246 = sshll.u32 %s239, 4
          %s247 = int_to_ptr.vmem [resolvable:$true] %s246
          %249 = dma.hbm_to_vmem [thread:$0]  %s244, 128, %s247, %s236
        $region28: #{tpu_custom_call.1} parent=15 // pred_fallthru
          _
      $region16: #{tpu_custom_call.1} parent=5 // pred_fallthru
        _
      %p250 = scmp.le.s32.totalorder 1, %s28
      %p251 = scmp.lt.s32.totalorder %s28, 3
      %p252 = pnand %p250, %p251
      %p253 = pneg %p252
      // Predicated region
      $region29: #{tpu_custom_call.1} parent=5 // pred_check
        _
      $region30: #{tpu_custom_call.1} parent=5 // pred_check_branch
        %255 = sbr.rel (%p252) target = $region32
      $region31: #{tpu_custom_call.1} parent=5 // pred_region
        %s256 = ssub.s32 %s28, 1
        %s257 = sand.u32 %s55, 1
        %s258 = scalar_lea.sflag [#allocation5], %s257
        %s259 = sand.u32 %s55, 1
        %s260 = smul.addr %s259, 8
        %s261 = scalar_lea.vmem [#allocation4], %s260
        // Predicated region
        $region33: #{tpu_custom_call.1} parent=31 // pred_check
          %p262 = pneg %p68
        $region34: #{tpu_custom_call.1} parent=31 // pred_check_branch
          %264 = sbr.rel (%p262) target = $region36
        $region35: #{tpu_custom_call.1} parent=31 // pred_region
          %265 = dma.done %s258, 128
        $region36: #{tpu_custom_call.1} parent=31 // pred_fallthru
          _
        %s266 = sand.u32 %s33, 1
        %s267 = scalar_lea.sflag [#allocation8], %s266
        %s268 = sand.u32 %s81, 1
        %s269 = smul.addr %s268, 8
        %s270 = scalar_lea.vmem [#allocation7], %s269
        // Predicated region
        $region37: #{tpu_custom_call.1} parent=31 // pred_check
          %p271 = pneg %p94
        $region38: #{tpu_custom_call.1} parent=31 // pred_check_branch
          %273 = sbr.rel (%p271) target = $region40
        $region39: #{tpu_custom_call.1} parent=31 // pred_region
          %274 = dma.done %s267, 128
        $region40: #{tpu_custom_call.1} parent=31 // pred_fallthru
          _
        %s275 = sand.u32 %s33, 1
        %s276 = scalar_lea.sflag [#allocation8], %s275
        %s277 = sand.u32 %s107, 1
        %s278 = smul.addr %s277, 8
        %s279 = scalar_lea.vmem [#allocation9], %s278
        // Predicated region
        $region41: #{tpu_custom_call.1} parent=31 // pred_check
          %p280 = pneg %p120
        $region42: #{tpu_custom_call.1} parent=31 // pred_check_branch
          %282 = sbr.rel (%p280) target = $region44
        $region43: #{tpu_custom_call.1} parent=31 // pred_region
          %283 = dma.done %s276, 128
        $region44: #{tpu_custom_call.1} parent=31 // pred_fallthru
          _
        %s284 = sand.u32 %s55, 1
        %s285 = scalar_lea.sflag [#allocation5], %s284
        %s286 = sand.u32 %s55, 1
        %s287 = smul.addr %s286, 8
        %s288 = scalar_lea.vmem [#allocation4], %s287
        %p289 = pneg %p68
        %p290 = pneg %p65
        %s291 = sand.u32 %s33, 1
        %s292 = scalar_lea.sflag [#allocation8], %s291
        %s293 = sand.u32 %s81, 1
        %s294 = smul.addr %s293, 8
        %s295 = scalar_lea.vmem [#allocation7], %s294
        %p296 = pneg %p94
        %p297 = pneg %p91
        %s298 = sand.u32 %s33, 1
        %s299 = scalar_lea.sflag [#allocation8], %s298
        %s300 = sand.u32 %s107, 1
        %s301 = smul.addr %s300, 8
        %s302 = scalar_lea.vmem [#allocation9], %s301
        %p303 = pneg %p120
        %p304 = pneg %p117
        %p305 = pneg %p148
        %p306 = pneg %p145
        %s307 = sand.u32 %s135, 1
        %s308 = scalar_lea.sflag [#allocation6], %s307
        %s309 = sand.u32 %s135, 1
        %s310 = smul.addr %s309, 8
        %s311 = scalar_lea.vmem [#allocation10], %s310
        %p312 = pneg %p176
        %p313 = pneg %p173
        %s314 = sand.u32 %s163, 1
        %s315 = scalar_lea.sflag [#allocation12], %s314
        %s316 = sand.u32 %s163, 1
        %s317 = smul.addr %s316, 8
        %s318 = scalar_lea.vmem [#allocation11], %s317
        %v319 = vld [vmem:[%s261] sm:$0xff]
        %v320 = vld [vmem:[%s270] sm:$0xff]
        %v321 = vld [vmem:[%s279] sm:$0xff]
        %vm322 = vcmask 261120
        %v324 = vsel %vm322, %v319, 0
        %v327 = vsel %vm322, %v320, 0
        %329 = vmatprep.subr.mxu0 0.0
        %330 = vmatpush1.xpose.msra.mxu0 0.0
        %331 = vmatprep.subr.mxu0 0.0
        %332 = vmatpush1.xpose.msra.mxu0 0.0
        %333 = vmatprep.subr.mxu0 0.0
        %334 = vmatpush1.xpose.msra.mxu0 0.0
        %335 = vmatprep.subr.mxu0 0.0
        %336 = vmatpush1.xpose.msra.mxu0 0.0
        %337 = vmatprep.subr.mxu0 0.0
        %338 = vmatpush1.xpose.msra.mxu0 0.0
        %339 = vmatprep.subr.mxu0 0.0
        %340 = vmatpush1.xpose.msra.mxu0 0.0
        %341 = vmatprep.subr.mxu0 0.0
        %342 = vmatpush1.xpose.msra.mxu0 0.0
        %343 = vmatprep.subr.mxu0 0.0
        %344 = vmatpush1.xpose.msra.mxu0 0.0
        %345 = vmatprep.subr.mxu0 0.0
        %346 = vmatpush1.xpose.msra.mxu0 0.0
        %347 = vmatprep.subr.mxu0 0.0
        %348 = vmatpush1.xpose.msra.mxu0 0.0
        %349 = vmatprep.subr.mxu0 0.0
        %350 = vmatpush1.xpose.msra.mxu0 0.0
        %351 = vmatprep.subr.mxu0 0.0
        %352 = vmatpush1.xpose.msra.mxu0 0.0
        %353 = vmatprep.subr.mxu0 0.0
        %354 = vmatpush1.xpose.msra.mxu0 0.0
        %355 = vmatprep.subr.mxu0 0.0
        %356 = vmatpush1.xpose.msra.mxu0 0.0
        %357 = vmatprep.subr.mxu0 0.0
        %358 = vmatpush1.xpose.msra.mxu0 0.0
        %359 = vmatprep.subr.mxu0 0.0
        %360 = vmatpush1.xpose.msra.mxu0 %v327
        %361 = vmatprep.subr.mxu0 0.0
        %362 = vmatpush2.xpose.msra.mxu0 0.0
        %363 = vmatprep.subr.mxu0 0.0
        %364 = vmatpush2.xpose.msra.mxu0 0.0
        %365 = vmatprep.subr.mxu0 0.0
        %366 = vmatpush2.xpose.msra.mxu0 0.0
        %367 = vmatprep.subr.mxu0 0.0
        %368 = vmatpush2.xpose.msra.mxu0 0.0
        %369 = vmatprep.subr.mxu0 0.0
        %370 = vmatpush2.xpose.msra.mxu0 0.0
        %371 = vmatprep.subr.mxu0 0.0
        %372 = vmatpush2.xpose.msra.mxu0 0.0
        %373 = vmatprep.subr.mxu0 0.0
        %374 = vmatpush2.xpose.msra.mxu0 0.0
        %375 = vmatprep.subr.mxu0 0.0
        %376 = vmatpush2.xpose.msra.mxu0 0.0
        %377 = vmatprep.subr.mxu0 0.0
        %378 = vmatpush2.xpose.msra.mxu0 0.0
        %379 = vmatprep.subr.mxu0 0.0
        %380 = vmatpush2.xpose.msra.mxu0 0.0
        %381 = vmatprep.subr.mxu0 0.0
        %382 = vmatpush2.xpose.msra.mxu0 0.0
        %383 = vmatprep.subr.mxu0 0.0
        %384 = vmatpush2.xpose.msra.mxu0 0.0
        %385 = vmatprep.subr.mxu0 0.0
        %386 = vmatpush2.xpose.msra.mxu0 0.0
        %387 = vmatprep.subr.mxu0 0.0
        %388 = vmatpush2.xpose.msra.mxu0 0.0
        %389 = vmatprep.subr.mxu0 0.0
        %390 = vmatpush2.xpose.msra.mxu0 0.0
        %391 = vmatprep.subr.mxu0 0.0
        %392 = vmatpush2.xpose.msra.mxu0 0.0
        %393 = vmatprep.mubr.f32.mxu0 0.0
        %394 = vmatmul.mubr.f32.gmra.mxu0 %v324
        %v395 = vpop.f32.mrf.mxu0
        %v396 = vadd.f32 0.0, %v395
        %v397 = vpop.f32.mrf.mxu0
        %398 = vdwg.mxu0
        %v399 = vmul.f32 %v396, 0.17677669
        %s400 = sld [smem:[#allocation3 + %s37]]
        %v401 = vlaneseq
        %v402 = vand.u32 %v401, 127
        %v403 = vstv %s400
        %vm404 = vcmp.ge.s32.totalorder %v402, %v403
        %v405 = vsel %vm404, -1000000.0, %v399
        %vm406 = vcmask 64512
        %v407 = vsel %vm406, %v405, -inf
        %408 = vmax.xlane.f32.xlu0 %v407
        %v409 = vpop.xlane.xlu0 %408
        %v410 = vsub.f32 %v405, %v409
        %v411 = vmul.f32 %v410, 1.442695
        %v412 = vpow.pop %v411
        %v413 = vsel %vm406, %v412, 0.0
        %414 = vadd.xlane.f32.xlu0 %v413
        %v415 = vpop.xlane.xlu0 %414
        %v416 = vrcp.pop %v415
        %v417 = vmul.f32 %v412, %v416
        %418 = vst.msk [vmem:[%s318] sm:$0xff] %vm406, %v417
        %v420 = vsel %vm406, %v417, 0
        %422 = vmatprep.subr.mxu0 0.0
        %423 = vmatpush1.msra.mxu0 0.0
        %424 = vmatprep.subr.mxu0 0.0
        %425 = vmatpush1.msra.mxu0 0.0
        %426 = vmatprep.subr.mxu0 0.0
        %427 = vmatpush1.msra.mxu0 0.0
        %428 = vmatprep.subr.mxu0 0.0
        %429 = vmatpush1.msra.mxu0 0.0
        %430 = vmatprep.subr.mxu0 0.0
        %431 = vmatpush1.msra.mxu0 0.0
        %432 = vmatprep.subr.mxu0 0.0
        %433 = vmatpush1.msra.mxu0 0.0
        %434 = vmatprep.subr.mxu0 0.0
        %435 = vmatpush1.msra.mxu0 0.0
        %436 = vmatprep.subr.mxu0 0.0
        %437 = vmatpush1.msra.mxu0 0.0
        %438 = vmatprep.subr.mxu0 0.0
        %439 = vmatpush1.msra.mxu0 0.0
        %440 = vmatprep.subr.mxu0 0.0
        %441 = vmatpush1.msra.mxu0 0.0
        %442 = vmatprep.subr.mxu0 0.0
        %443 = vmatpush1.msra.mxu0 0.0
        %444 = vmatprep.subr.mxu0 0.0
        %445 = vmatpush1.msra.mxu0 0.0
        %446 = vmatprep.subr.mxu0 0.0
        %447 = vmatpush1.msra.mxu0 0.0
        %448 = vmatprep.subr.mxu0 0.0
        %449 = vmatpush1.msra.mxu0 0.0
        %450 = vmatprep.subr.mxu0 0.0
        %451 = vmatpush1.msra.mxu0 0.0
        %452 = vmatprep.subr.mxu0 0.0
        %453 = vmatpush1.msra.mxu0 %v321
        %454 = vmatprep.subr.mxu0 0.0
        %455 = vmatpush2.msra.mxu0 0.0
        %456 = vmatprep.subr.mxu0 0.0
        %457 = vmatpush2.msra.mxu0 0.0
        %458 = vmatprep.subr.mxu0 0.0
        %459 = vmatpush2.msra.mxu0 0.0
        %460 = vmatprep.subr.mxu0 0.0
        %461 = vmatpush2.msra.mxu0 0.0
        %462 = vmatprep.subr.mxu0 0.0
        %463 = vmatpush2.msra.mxu0 0.0
        %464 = vmatprep.subr.mxu0 0.0
        %465 = vmatpush2.msra.mxu0 0.0
        %466 = vmatprep.subr.mxu0 0.0
        %467 = vmatpush2.msra.mxu0 0.0
        %468 = vmatprep.subr.mxu0 0.0
        %469 = vmatpush2.msra.mxu0 0.0
        %470 = vmatprep.subr.mxu0 0.0
        %471 = vmatpush2.msra.mxu0 0.0
        %472 = vmatprep.subr.mxu0 0.0
        %473 = vmatpush2.msra.mxu0 0.0
        %474 = vmatprep.subr.mxu0 0.0
        %475 = vmatpush2.msra.mxu0 0.0
        %476 = vmatprep.subr.mxu0 0.0
        %477 = vmatpush2.msra.mxu0 0.0
        %478 = vmatprep.subr.mxu0 0.0
        %479 = vmatpush2.msra.mxu0 0.0
        %480 = vmatprep.subr.mxu0 0.0
        %481 = vmatpush2.msra.mxu0 0.0
        %482 = vmatprep.subr.mxu0 0.0
        %483 = vmatpush2.msra.mxu0 0.0
        %484 = vmatprep.subr.mxu0 0.0
        %485 = vmatpush2.msra.mxu0 0.0
        %486 = vmatprep.mubr.f32.mxu0 0.0
        %487 = vmatmul.mubr.f32.gmra.mxu0 %v420
        %v488 = vpop.f32.mrf.mxu0
        %v489 = vadd.f32 0.0, %v488
        %v490 = vpop.f32.mrf.mxu0
        %491 = vdwg.mxu0
        %492 = vst.msk [vmem:[%s311] sm:$0xff] %vm322, %v489
        %s493 = sand.u32 %s135, 1
        %s494 = scalar_lea.sflag [#allocation6], %s493
        %s495 = sand.u32 %s135, 1
        %s496 = smul.addr %s495, 8
        %s497 = scalar_lea.vmem [#allocation10], %s496
        %s498 = sand.u32 %s163, 1
        %s499 = scalar_lea.sflag [#allocation12], %s498
        %s500 = sand.u32 %s163, 1
        %s501 = smul.addr %s500, 8
        %s502 = scalar_lea.vmem [#allocation11], %s501
        // Predicated region
        $region45: #{tpu_custom_call.1} parent=31 // pred_check
          %p503 = pneg %p145
        $region46: #{tpu_custom_call.1} parent=31 // pred_check_branch
          %505 = sbr.rel (%p503) target = $region48
        $region47: #{tpu_custom_call.1} parent=31 // pred_region
          %s507 = ssub.s32 128, 128
          %508 = vsyncadd %s494, %s507
          %s509 = sadd.s32 %s38, %s37
          %s510 = smul.addr %s509, 128
          %s511 = scalar_lea.hbm %s4, %s510
          %s513 = sshll.u32 %s497, 4
          %s514 = int_to_ptr.vmem [resolvable:$true] %s513
          %516 = dma.vmem_to_hbm [thread:$0]  %s514, 128, %s511, %s494
        $region48: #{tpu_custom_call.1} parent=31 // pred_fallthru
          _
        // Predicated region
        $region49: #{tpu_custom_call.1} parent=31 // pred_check
          %p517 = pneg %p173
        $region50: #{tpu_custom_call.1} parent=31 // pred_check_branch
          %519 = sbr.rel (%p517) target = $region52
        $region51: #{tpu_custom_call.1} parent=31 // pred_region
          %s521 = ssub.s32 128, 128
          %522 = vsyncadd %s499, %s521
          %s523 = sadd.s32 %s38, %s37
          %s524 = smul.addr %s523, 128
          %s525 = scalar_lea.hbm %s5, %s524
          %s527 = sshll.u32 %s502, 4
          %s528 = int_to_ptr.vmem [resolvable:$true] %s527
          %530 = dma.vmem_to_hbm [thread:$0]  %s528, 128, %s525, %s499
        $region52: #{tpu_custom_call.1} parent=31 // pred_fallthru
          _
      $region32: #{tpu_custom_call.1} parent=5 // pred_fallthru
        _
      %p531 = scmp.le.s32.totalorder 2, %s28
      // Predicated region
      $region53: #{tpu_custom_call.1} parent=5 // pred_check
        %p532 = pneg %p531
      $region54: #{tpu_custom_call.1} parent=5 // pred_check_branch
        %534 = sbr.rel (%p532) target = $region56
      $region55: #{tpu_custom_call.1} parent=5 // pred_region
        %s535 = ssub.s32 %s28, 2
        // Predicated region
        $region57: #{tpu_custom_call.1} parent=55 // pred_check
          %p536 = pneg %p151
        $region58: #{tpu_custom_call.1} parent=55 // pred_check_branch
          %538 = sbr.rel (%p536) target = $region60
        $region59: #{tpu_custom_call.1} parent=55 // pred_region
          %s539 = sand.u32 %s136, 1
          %s540 = scalar_lea.sflag [#allocation6], %s539
          %s541 = sand.u32 %s136, 1
          %s542 = smul.addr %s541, 8
          %s543 = scalar_lea.vmem [#allocation10], %s542
          %544 = dma.done %s540, 128
        $region60: #{tpu_custom_call.1} parent=55 // pred_fallthru
          _
        // Predicated region
        $region61: #{tpu_custom_call.1} parent=55 // pred_check
          %p545 = pneg %p179
        $region62: #{tpu_custom_call.1} parent=55 // pred_check_branch
          %547 = sbr.rel (%p545) target = $region64
        $region63: #{tpu_custom_call.1} parent=55 // pred_region
          %s548 = sand.u32 %s164, 1
          %s549 = scalar_lea.sflag [#allocation12], %s548
          %s550 = sand.u32 %s164, 1
          %s551 = smul.addr %s550, 8
          %s552 = scalar_lea.vmem [#allocation11], %s551
          %553 = dma.done %s549, 128
        $region64: #{tpu_custom_call.1} parent=55 // pred_fallthru
          _
      $region56: #{tpu_custom_call.1} parent=5 // pred_fallthru
        _
    $region6: #{tpu_custom_call.1} parent=1 // loop_footer
      %s32 = sadd.s32 1, %s28
    $region7: #{tpu_custom_call.1} parent=1 // loop_footer_branch
      %27 = sbr.rel target = $region3
    $region8: #{tpu_custom_call.1} parent=1 // loop_exit
      _
    %554 = vsyncpa [#allocation5], 1
    %s555 = scalar_lea.sflag [#allocation5], 1
    %556 = vsyncpa %s555, 1
    %557 = vsyncpa [#allocation8], 1
    %s558 = scalar_lea.sflag [#allocation8], 1
    %559 = vsyncpa %s558, 1
    %560 = vsyncpa [#allocation6], 1
    %s561 = scalar_lea.sflag [#allocation6], 1
    %562 = vsyncpa %s561, 1
    %563 = vsyncpa [#allocation12], 1
    %s564 = scalar_lea.sflag [#allocation12], 1
    %565 = vsyncpa %s564, 1

</llo_original>
